<compile_context>
chip_gen: v7x
topology: tpu7x:2x2x1
jax: 0.10.0
libtpu: 0.0.40
codegen_flags: <defaults>
</compile_context>

<pallas_src>
import functools

import jax
import jax.numpy as jnp
from jax.experimental import pallas as pl
from jax.experimental.pallas import tpu as pltpu


# ----------------------------------------------------------------------------
# NeRF/IDR positional-embedding spec (include_input=True, log_sampling=True,
# periodic_fns=[sin, cos]).  Frequencies are exactly 2^k, which is what lets
# the kernel use the doubling recurrence instead of per-frequency sin/cos.
# ----------------------------------------------------------------------------
def embedder_freqs(multires):
    return tuple(float(2.0 ** i) for i in range(multires))


def embed_out_ch(multires, input_dims=3):
    return input_dims * (1 + 2 * multires)


def apply_embedding(x, freqs):
    """Plain-JAX embedding (used only by the pure-JAX reference)."""
    outs = [x]
    for f in freqs:
        outs.append(jnp.sin(x * f))
        outs.append(jnp.cos(x * f))
    return jnp.concatenate(outs, axis=-1)


def _pick_row_tile(n):
    """Adaptive row tile (lane axis).

    Big tiles amortize the ~0.35us/grid-step overhead; keep roughly >= 8 grid
    steps for pipeline depth and balanced megacore sharding, cap at 2048 so
    per-step VMEM / register pressure stays modest on every generation.
    """
    target = max(128, n // 8)
    tile = (target // 128) * 128
    return max(128, min(2048, tile))


# ----------------------------------------------------------------------------
# Pallas kernel: fused (embedding + concat + MLP + tanh + (x+1)/2), one row
# tile per grid step, everything feature-major (channels on sublanes, rows on
# lanes).
#
# refs layout:
#   x_ref        (C_raw, row_tile)  fused raw input (mode concat order)
#   w0_raw_ref   (d1, C_raw)        W0 rows of the un-embedded channels, ^T
#   [w0_sc_ref]  (d1, K_sc)         W0 rows of the sin/cos channels, ^T
#   b0_ref       (d1, 1)
#   (w_l^T (d_{l+1}, d_l), b_l (d_{l+1}, 1)) for every remaining layer
#   out_ref      (d_out, row_tile)
#   [sc_ref]     (K_sc, row_tile)   VMEM scratch for the sin/cos features
#
# `sincos_plan` is a static tuple of (raw_row_offset, channels, num_freqs).
# ----------------------------------------------------------------------------
def _render_kernel(*refs, sincos_plan, num_hidden_layers):
    has_sc = len(sincos_plan) > 0
    if has_sc:
        x_ref, w0_raw_ref, w0_sc_ref, b0_ref = refs[:4]
        lin_refs = refs[4:-2]
        out_ref = refs[-2]
        sc_ref = refs[-1]
    else:
        x_ref, w0_raw_ref, b0_ref = refs[:3]
        lin_refs = refs[3:-1]
        out_ref = refs[-1]
        sc_ref = None

    # ---- sin/cos features (lane-dense).  Only the base frequency hits the
    # EUP; higher power-of-two frequencies come from the VALU recurrence
    #   sin(2x) = 2 sin(x) cos(x),   cos(2x) = 1 - 2 sin^2(x).
    # Every scratch row is rewritten each grid step (contiguous offsets), so
    # the scratch needs no zero-init and stays correct when the "parallel"
    # grid is split across TensorCores.
    if has_sc:
        off = 0
        for (roff, c, nf) in sincos_plan:
            base = x_ref[pl.ds(roff, c), :]
            s = jnp.sin(base)
            co = jnp.cos(base)
            sc_ref[pl.ds(off, c), :] = s
            sc_ref[pl.ds(off + c, c), :] = co
            off += 2 * c
            for _ in range(nf - 1):
                s, co = 2.0 * s * co, 1.0 - 2.0 * s * s
                sc_ref[pl.ds(off, c), :] = s
                sc_ref[pl.ds(off + c, c), :] = co
                off += 2 * c

    # ---- layer 0: two coalesced MXU passes (raw rows + sin/cos rows) + bias.
    h = jnp.dot(w0_raw_ref[...], x_ref[...], preferred_element_type=jnp.float32)
    if has_sc:
        h = h + jnp.dot(w0_sc_ref[...], sc_ref[...],
                        preferred_element_type=jnp.float32)
    h = h + b0_ref[...]

    # ---- remaining linears (ReLU after every linear except the last).
    for l in range(num_hidden_layers):
        h = jnp.maximum(h, 0.0)
        h = jnp.dot(lin_refs[2 * l][...], h,
                    preferred_element_type=jnp.float32) + lin_refs[2 * l + 1][...]

    out_ref[...] = ((jnp.tanh(h) + 1.0) * 0.5).astype(out_ref.dtype)


# ----------------------------------------------------------------------------
# RenderingNetwork in JAX + Pallas
# ----------------------------------------------------------------------------
class RenderingNetwork:
    def __init__(self, feature_vector_size, mode, d_in, d_out, dims,
                 weight_norm=True, multires_view=0, multires_xyz=0,
                 key=jax.random.PRNGKey(0)):
        self.feature_vector_size = feature_vector_size
        self.mode = mode

        dims = [d_in + feature_vector_size] + list(dims) + [d_out]

        self.view_freqs = None
        if multires_view > 0:
            self.view_freqs = embedder_freqs(multires_view)
            dims[0] += embed_out_ch(multires_view) - 3

        self.xyz_freqs = None
        if multires_xyz > 0:
            self.xyz_freqs = embedder_freqs(multires_xyz)
            dims[0] += embed_out_ch(multires_xyz) - 3

        self.dims = dims
        self.num_layers = len(dims)  # number of linear layers = num_layers - 1

        # Deterministic parameter init.  nn.utils.weight_norm at init is an
        # identity reparameterization (g*v/||v|| == W), so plain (W, b) is an
        # exact forward-pass equivalent.
        # TODO(synk): when loading trained torch weights, fold g*v/||v|| into W
        # host-side before handing the params to the kernel.
        self.params = []
        for l in range(self.num_layers - 1):
            key, kw, kb = jax.random.split(key, 3)
            fan_in, fan_out = dims[l], dims[l + 1]
            bound = 1.0 / (float(fan_in) ** 0.5)
            w = jax.random.uniform(kw, (fan_in, fan_out), jnp.float32,
                                   -bound, bound)
            b = jax.random.uniform(kb, (1, fan_out), jnp.float32,
                                   -bound, bound)
            self.params.append((w, b))

    # -- raw concat order of the rendering input, per mode --------------------
    def _piece_order(self, has_features):
        if self.mode == 'idr':
            names = ['points', 'view', 'normals']
        elif self.mode == 'no_view_dir':
            names = ['points', 'normals']
        elif self.mode == 'no_normal':
            names = ['points', 'view']
        else:
            raise ValueError(f"bad mode {self.mode}")
        if has_features:
            names.append('features')
        return names

    def __call__(self, points, normals, view_dirs, feature_vectors=None,
                 row_tile=None):
        arrays = {'points': points, 'normals': normals, 'view': view_dirs,
                  'features': feature_vectors}
        freqs_by_name = {'points': self.xyz_freqs, 'view': self.view_freqs,
                         'normals': None, 'features': None}
        names = self._piece_order(feature_vectors is not None)

        n = points.shape[0]
        d1 = self.dims[1]
        d_out = self.dims[-1]

        # ---- static layer-0 plan: which W0 rows feed the raw matmul, which
        # feed the sin/cos matmul, and where each embedded piece sits in the
        # fused raw input.
        raw_rows, sc_rows, sincos_plan = [], [], []
        emb_off, raw_off = 0, 0
        for name in names:
            c = arrays[name].shape[-1]
            freqs = freqs_by_name[name]
            nf = len(freqs) if freqs else 0
            raw_rows.extend(range(emb_off, emb_off + c))
            if nf > 0:
                sincos_plan.append((raw_off, c, nf))
                sc_rows.extend(range(emb_off + c, emb_off + c + 2 * nf * c))
            emb_off += c * (1 + 2 * nf)
            raw_off += c

        w0, b0 = self.params[0]
        assert emb_off == w0.shape[0], "embedding plan mismatch"
        k_sc = len(sc_rows)

        w0_rawT = jnp.transpose(w0[jnp.asarray(raw_rows, dtype=jnp.int32)])
        w0_scT = (jnp.transpose(w0[jnp.asarray(sc_rows, dtype=jnp.int32)])
                  if k_sc else None)

        # ---- feature-major fused input: single wrapper-side repack + pad.
        if row_tile is None:
            row_tile = _pick_row_tile(n)
        n_pad = pl.cdiv(n, row_tile) * row_tile
        x_fm = jnp.transpose(
            jnp.concatenate([arrays[name] for name in names], axis=-1)
        ).astype(jnp.float32)                                    # (C_raw, n)
        if n_pad != n:
            x_fm = jnp.pad(x_fm, ((0, 0), (0, n_pad - n)))
        c_raw = x_fm.shape[0]

        def resident(shape):
            # Constant block index -> single DMA, stays VMEM-resident.
            return pl.BlockSpec(shape, lambda i: (0, 0))

        operands = [x_fm, w0_rawT]
        in_specs = [pl.BlockSpec((c_raw, row_tile), lambda i: (0, i)),
                    resident(w0_rawT.shape)]
        if k_sc:
            operands.append(w0_scT)
            in_specs.append(resident(w0_scT.shape))
        operands.append(jnp.transpose(b0))                       # (d1, 1)
        in_specs.append(resident((d1, 1)))
        for w, b in self.params[1:]:
            wT, bT = jnp.transpose(w), jnp.transpose(b)
            operands.extend([wT, bT])
            in_specs.extend([resident(wT.shape), resident(bT.shape)])

        scratch_shapes = ([pltpu.VMEM((k_sc, row_tile), jnp.float32)]
                          if k_sc else [])

        kernel = functools.partial(
            _render_kernel,
            sincos_plan=tuple(sincos_plan),
            num_hidden_layers=len(self.params) - 1,
        )

        out_fm = pl.pallas_call(
            kernel,
            out_shape=jax.ShapeDtypeStruct((d_out, n_pad), jnp.float32),
            grid_spec=pltpu.PrefetchScalarGridSpec(
                num_scalar_prefetch=0,
                grid=(n_pad // row_tile,),
                in_specs=in_specs,
                out_specs=pl.BlockSpec((d_out, row_tile), lambda i: (0, i)),
                scratch_shapes=scratch_shapes,
            ),
            compiler_params=pltpu.CompilerParams(
                dimension_semantics=("parallel",)),
        )(*operands)

        return jnp.transpose(out_fm)[:n]

    # Pure-JAX reference (embedding + concat + MLP) for verification.
    def reference(self, points, normals, view_dirs, feature_vectors=None):
        arrays = {'points': points, 'normals': normals, 'view': view_dirs,
                  'features': feature_vectors}
        freqs_by_name = {'points': self.xyz_freqs, 'view': self.view_freqs,
                         'normals': None, 'features': None}
        pieces = []
        for name in self._piece_order(feature_vectors is not None):
            arr = arrays[name]
            freqs = freqs_by_name[name]
            if freqs:
                arr = apply_embedding(arr, freqs)
            pieces.append(arr)
        h = jnp.concatenate(pieces, axis=-1)
        for l, (w, b) in enumerate(self.params):
            h = h @ w + b
            if l < len(self.params) - 1:
                h = jnp.maximum(h, 0.0)
        return (jnp.tanh(h) + 1.0) / 2.0


if __name__ == "__main__":
    key = jax.random.PRNGKey(0)

    # Small, module-consistent shapes.
    feature_vector_size = 16
    d_in, d_out = 9, 3                 # points(3)+view(3)+normals(3) -> rgb
    hidden_dims = [32, 32]
    multires_view = 4

    net = RenderingNetwork(
        feature_vector_size=feature_vector_size,
        mode='idr',
        d_in=d_in,
        d_out=d_out,
        dims=hidden_dims,
        weight_norm=True,
        multires_view=multires_view,
        multires_xyz=0,
        key=jax.random.fold_in(key, 123),
    )

    ok = True
    # Two sizes: one exact multiple of the tile, one that exercises padding.
    for N in (256, 1000):
        kk = jax.random.fold_in(key, N)
        p1, p2, p3, p4 = jax.random.split(kk, 4)
        points = jax.random.normal(p1, (N, 3), jnp.float32)
        normals = jax.random.normal(p2, (N, 3), jnp.float32)
        view_dirs = jax.random.normal(p3, (N, 3), jnp.float32)
        feature_vectors = jax.random.normal(p4, (N, feature_vector_size),
                                            jnp.float32)

        out = net(points, normals, view_dirs, feature_vectors)
        out = jax.block_until_ready(out)
        ref = net.reference(points, normals, view_dirs, feature_vectors)

        assert out.shape == (N, d_out)
        # 1e-4 tolerance: in-kernel sin/cos + the power-of-two doubling
        # recurrence differ from XLA's exact per-frequency sin/cos at ~1e-6.
        assert jnp.max(jnp.abs(out - ref)) < 1e-4
        ok = ok and bool(jnp.isfinite(out).all())

    if ok:
        print("KERNEL_OK")
</pallas_src>

<mosaic_0001>
module attributes {stable_mosaic.version = 11 : i64} {
  func.func @_render_kernel(%arg0: i32, %arg1: memref<25x128xf32, #tpu.memory_space<vmem>>, %arg2: memref<32x25xf32, #tpu.memory_space<vmem>>, %arg3: memref<32x24xf32, #tpu.memory_space<vmem>>, %arg4: memref<32x1xf32, #tpu.memory_space<vmem>>, %arg5: memref<32x32xf32, #tpu.memory_space<vmem>>, %arg6: memref<32x1xf32, #tpu.memory_space<vmem>>, %arg7: memref<3x32xf32, #tpu.memory_space<vmem>>, %arg8: memref<3x1xf32, #tpu.memory_space<vmem>>, %arg9: memref<3x128xf32, #tpu.memory_space<vmem>>, %arg10: memref<24x128xf32, #tpu.memory_space<vmem>>) attributes {dimension_semantics = [#tpu.dimension_semantics<parallel>], iteration_bounds = array<i64: 2>, scalar_prefetch = 0 : i64, scratch_operands = 1 : i64, tpu.core_type = #tpu.core_type<tc>, window_params = [{transform_indices = @transform_0, window_bounds = array<i64: 25, 128>}, {pipeline_mode = #tpu.pipeline_mode<synchronous>, transform_indices = @transform_1, window_bounds = array<i64: 32, 25>}, {pipeline_mode = #tpu.pipeline_mode<synchronous>, transform_indices = @transform_2, window_bounds = array<i64: 32, 24>}, {pipeline_mode = #tpu.pipeline_mode<synchronous>, transform_indices = @transform_3, window_bounds = array<i64: 32, 1>}, {pipeline_mode = #tpu.pipeline_mode<synchronous>, transform_indices = @transform_4, window_bounds = array<i64: 32, 32>}, {pipeline_mode = #tpu.pipeline_mode<synchronous>, transform_indices = @transform_5, window_bounds = array<i64: 32, 1>}, {pipeline_mode = #tpu.pipeline_mode<synchronous>, transform_indices = @transform_6, window_bounds = array<i64: 3, 32>}, {pipeline_mode = #tpu.pipeline_mode<synchronous>, transform_indices = @transform_7, window_bounds = array<i64: 3, 1>}, {transform_indices = @transform_8, window_bounds = array<i64: 3, 128>}]} {
    %c3 = arith.constant 3 : index
    %c0 = arith.constant 0 : index
    %0 = vector.load %arg1[%c3, %c0] : memref<25x128xf32, #tpu.memory_space<vmem>>, vector<3x128xf32>
    %1 = math.sin %0 : vector<3x128xf32>
    %2 = math.cos %0 : vector<3x128xf32>
    %c0_0 = arith.constant 0 : index
    %c0_1 = arith.constant 0 : index
    %3 = vector.load %arg10[%c0_0, %c0_1] : memref<24x128xf32, #tpu.memory_space<vmem>>, vector<3x128xf32>
    tpu.vector_store %arg10[%c0_0, %c0_1], %1 {strides = array<i32>} : memref<24x128xf32, #tpu.memory_space<vmem>>, vector<3x128xf32>,
    %c3_2 = arith.constant 3 : index
    %c0_3 = arith.constant 0 : index
    %4 = vector.load %arg10[%c3_2, %c0_3] : memref<24x128xf32, #tpu.memory_space<vmem>>, vector<3x128xf32>
    tpu.vector_store %arg10[%c3_2, %c0_3], %2 {strides = array<i32>} : memref<24x128xf32, #tpu.memory_space<vmem>>, vector<3x128xf32>,
    %cst = arith.constant 2.000000e+00 : f32
    %5 = vector.broadcast %cst : f32 to vector<3x128xf32>
    %6 = arith.mulf %5, %1 : vector<3x128xf32>
    %7 = arith.mulf %6, %2 : vector<3x128xf32>
    %cst_4 = arith.constant 2.000000e+00 : f32
    %8 = vector.broadcast %cst_4 : f32 to vector<3x128xf32>
    %9 = arith.mulf %8, %1 : vector<3x128xf32>
    %10 = arith.mulf %9, %1 : vector<3x128xf32>
    %cst_5 = arith.constant 1.000000e+00 : f32
    %11 = vector.broadcast %cst_5 : f32 to vector<3x128xf32>
    %12 = arith.subf %11, %10 : vector<3x128xf32>
    %c6 = arith.constant 6 : index
    %c0_6 = arith.constant 0 : index
    %13 = vector.load %arg10[%c6, %c0_6] : memref<24x128xf32, #tpu.memory_space<vmem>>, vector<3x128xf32>
    tpu.vector_store %arg10[%c6, %c0_6], %7 {strides = array<i32>} : memref<24x128xf32, #tpu.memory_space<vmem>>, vector<3x128xf32>,
    %c9 = arith.constant 9 : index
    %c0_7 = arith.constant 0 : index
    %14 = vector.load %arg10[%c9, %c0_7] : memref<24x128xf32, #tpu.memory_space<vmem>>, vector<3x128xf32>
    tpu.vector_store %arg10[%c9, %c0_7], %12 {strides = array<i32>} : memref<24x128xf32, #tpu.memory_space<vmem>>, vector<3x128xf32>,
    %cst_8 = arith.constant 2.000000e+00 : f32
    %15 = vector.broadcast %cst_8 : f32 to vector<3x128xf32>
    %16 = arith.mulf %15, %7 : vector<3x128xf32>
    %17 = arith.mulf %16, %12 : vector<3x128xf32>
    %cst_9 = arith.constant 2.000000e+00 : f32
    %18 = vector.broadcast %cst_9 : f32 to vector<3x128xf32>
    %19 = arith.mulf %18, %7 : vector<3x128xf32>
    %20 = arith.mulf %19, %7 : vector<3x128xf32>
    %cst_10 = arith.constant 1.000000e+00 : f32
    %21 = vector.broadcast %cst_10 : f32 to vector<3x128xf32>
    %22 = arith.subf %21, %20 : vector<3x128xf32>
    %c12 = arith.constant 12 : index
    %c0_11 = arith.constant 0 : index
    %23 = vector.load %arg10[%c12, %c0_11] : memref<24x128xf32, #tpu.memory_space<vmem>>, vector<3x128xf32>
    tpu.vector_store %arg10[%c12, %c0_11], %17 {strides = array<i32>} : memref<24x128xf32, #tpu.memory_space<vmem>>, vector<3x128xf32>,
    %c15 = arith.constant 15 : index
    %c0_12 = arith.constant 0 : index
    %24 = vector.load %arg10[%c15, %c0_12] : memref<24x128xf32, #tpu.memory_space<vmem>>, vector<3x128xf32>
    tpu.vector_store %arg10[%c15, %c0_12], %22 {strides = array<i32>} : memref<24x128xf32, #tpu.memory_space<vmem>>, vector<3x128xf32>,
    %cst_13 = arith.constant 2.000000e+00 : f32
    %25 = vector.broadcast %cst_13 : f32 to vector<3x128xf32>
    %26 = arith.mulf %25, %17 : vector<3x128xf32>
    %27 = arith.mulf %26, %22 : vector<3x128xf32>
    %cst_14 = arith.constant 2.000000e+00 : f32
    %28 = vector.broadcast %cst_14 : f32 to vector<3x128xf32>
    %29 = arith.mulf %28, %17 : vector<3x128xf32>
    %30 = arith.mulf %29, %17 : vector<3x128xf32>
    %cst_15 = arith.constant 1.000000e+00 : f32
    %31 = vector.broadcast %cst_15 : f32 to vector<3x128xf32>
    %32 = arith.subf %31, %30 : vector<3x128xf32>
    %c18 = arith.constant 18 : index
    %c0_16 = arith.constant 0 : index
    %33 = vector.load %arg10[%c18, %c0_16] : memref<24x128xf32, #tpu.memory_space<vmem>>, vector<3x128xf32>
    tpu.vector_store %arg10[%c18, %c0_16], %27 {strides = array<i32>} : memref<24x128xf32, #tpu.memory_space<vmem>>, vector<3x128xf32>,
    %c21 = arith.constant 21 : index
    %c0_17 = arith.constant 0 : index
    %34 = vector.load %arg10[%c21, %c0_17] : memref<24x128xf32, #tpu.memory_space<vmem>>, vector<3x128xf32>
    tpu.vector_store %arg10[%c21, %c0_17], %32 {strides = array<i32>} : memref<24x128xf32, #tpu.memory_space<vmem>>, vector<3x128xf32>,
    %c0_18 = arith.constant 0 : index
    %c0_19 = arith.constant 0 : index
    %35 = vector.load %arg2[%c0_18, %c0_19] : memref<32x25xf32, #tpu.memory_space<vmem>>, vector<32x25xf32>
    %c0_20 = arith.constant 0 : index
    %c0_21 = arith.constant 0 : index
    %36 = vector.load %arg1[%c0_20, %c0_21] : memref<25x128xf32, #tpu.memory_space<vmem>>, vector<25x128xf32>
    %cst_22 = arith.constant dense<0.000000e+00> : vector<32x128xf32>
    %37 = tpu.matmul %35, %36, %cst_22 {dimension_numbers = #tpu.dot_dimension_numbers<[1], [0], [0], [1], [0, 0, 1, 1], [], []>} : vector<32x25xf32>, vector<25x128xf32>, vector<32x128xf32> -> vector<32x128xf32>
    %c0_23 = arith.constant 0 : index
    %c0_24 = arith.constant 0 : index
    %38 = vector.load %arg3[%c0_23, %c0_24] : memref<32x24xf32, #tpu.memory_space<vmem>>, vector<32x24xf32>
    %c0_25 = arith.constant 0 : index
    %c0_26 = arith.constant 0 : index
    %39 = vector.load %arg10[%c0_25, %c0_26] : memref<24x128xf32, #tpu.memory_space<vmem>>, vector<24x128xf32>
    %cst_27 = arith.constant dense<0.000000e+00> : vector<32x128xf32>
    %40 = tpu.matmul %38, %39, %cst_27 {dimension_numbers = #tpu.dot_dimension_numbers<[1], [0], [0], [1], [0, 0, 1, 1], [], []>} : vector<32x24xf32>, vector<24x128xf32>, vector<32x128xf32> -> vector<32x128xf32>
    %41 = arith.addf %37, %40 : vector<32x128xf32>
    %c0_28 = arith.constant 0 : index
    %c0_29 = arith.constant 0 : index
    %42 = vector.load %arg4[%c0_28, %c0_29] : memref<32x1xf32, #tpu.memory_space<vmem>>, vector<32x1xf32>
    %43 = vector.broadcast %42 : vector<32x1xf32> to vector<32x128xf32>
    %44 = arith.addf %41, %43 : vector<32x128xf32>
    %cst_30 = arith.constant 0.000000e+00 : f32
    %45 = vector.broadcast %cst_30 : f32 to vector<32x128xf32>
    %46 = arith.maximumf %44, %45 : vector<32x128xf32>
    %c0_31 = arith.constant 0 : index
    %c0_32 = arith.constant 0 : index
    %47 = vector.load %arg5[%c0_31, %c0_32] : memref<32x32xf32, #tpu.memory_space<vmem>>, vector<32x32xf32>
    %cst_33 = arith.constant dense<0.000000e+00> : vector<32x128xf32>
    %48 = tpu.matmul %47, %46, %cst_33 {dimension_numbers = #tpu.dot_dimension_numbers<[1], [0], [0], [1], [0, 0, 1, 1], [], []>} : vector<32x32xf32>, vector<32x128xf32>, vector<32x128xf32> -> vector<32x128xf32>
    %c0_34 = arith.constant 0 : index
    %c0_35 = arith.constant 0 : index
    %49 = vector.load %arg6[%c0_34, %c0_35] : memref<32x1xf32, #tpu.memory_space<vmem>>, vector<32x1xf32>
    %50 = vector.broadcast %49 : vector<32x1xf32> to vector<32x128xf32>
    %51 = arith.addf %48, %50 : vector<32x128xf32>
    %cst_36 = arith.constant 0.000000e+00 : f32
    %52 = vector.broadcast %cst_36 : f32 to vector<32x128xf32>
    %53 = arith.maximumf %51, %52 : vector<32x128xf32>
    %c0_37 = arith.constant 0 : index
    %c0_38 = arith.constant 0 : index
    %54 = vector.load %arg7[%c0_37, %c0_38] : memref<3x32xf32, #tpu.memory_space<vmem>>, vector<3x32xf32>
    %cst_39 = arith.constant dense<0.000000e+00> : vector<3x128xf32>
    %55 = tpu.matmul %54, %53, %cst_39 {dimension_numbers = #tpu.dot_dimension_numbers<[1], [0], [0], [1], [0, 0, 1, 1], [], []>} : vector<3x32xf32>, vector<32x128xf32>, vector<3x128xf32> -> vector<3x128xf32>
    %c0_40 = arith.constant 0 : index
    %c0_41 = arith.constant 0 : index
    %56 = vector.load %arg8[%c0_40, %c0_41] : memref<3x1xf32, #tpu.memory_space<vmem>>, vector<3x1xf32>
    %57 = vector.broadcast %56 : vector<3x1xf32> to vector<3x128xf32>
    %58 = arith.addf %55, %57 : vector<3x128xf32>
    %59 = math.tanh %58 : vector<3x128xf32>
    %cst_42 = arith.constant 1.000000e+00 : f32
    %60 = vector.broadcast %cst_42 : f32 to vector<3x128xf32>
    %61 = arith.addf %59, %60 : vector<3x128xf32>
    %cst_43 = arith.constant 5.000000e-01 : f32
    %62 = vector.broadcast %cst_43 : f32 to vector<3x128xf32>
    %63 = arith.mulf %61, %62 : vector<3x128xf32>
    %c0_44 = arith.constant 0 : index
    %c0_45 = arith.constant 0 : index
    %64 = vector.load %arg9[%c0_44, %c0_45] : memref<3x128xf32, #tpu.memory_space<vmem>>, vector<3x128xf32>
    tpu.vector_store %arg9[%c0_44, %c0_45], %63 {strides = array<i32>} : memref<3x128xf32, #tpu.memory_space<vmem>>, vector<3x128xf32>,
    return
  }
  func.func @transform_0(%arg0: i32) -> (i32, i32) {
    %c0_i32 = arith.constant 0 : i32
    %c0_i32_0 = arith.constant 0 : i32
    return %c0_i32, %arg0 : i32, i32
  }
  func.func @transform_1(%arg0: i32) -> (i32, i32) {
    %c0_i32 = arith.constant 0 : i32
    %c0_i32_0 = arith.constant 0 : i32
    %c0_i32_1 = arith.constant 0 : i32
    return %c0_i32, %c0_i32_0 : i32, i32
  }
  func.func @transform_2(%arg0: i32) -> (i32, i32) {
    %c0_i32 = arith.constant 0 : i32
    %c0_i32_0 = arith.constant 0 : i32
    %c0_i32_1 = arith.constant 0 : i32
    return %c0_i32, %c0_i32_0 : i32, i32
  }
  func.func @transform_3(%arg0: i32) -> (i32, i32) {
    %c0_i32 = arith.constant 0 : i32
    %c0_i32_0 = arith.constant 0 : i32
    %c0_i32_1 = arith.constant 0 : i32
    return %c0_i32, %c0_i32_0 : i32, i32
  }
  func.func @transform_4(%arg0: i32) -> (i32, i32) {
    %c0_i32 = arith.constant 0 : i32
    %c0_i32_0 = arith.constant 0 : i32
    %c0_i32_1 = arith.constant 0 : i32
    return %c0_i32, %c0_i32_0 : i32, i32
  }
  func.func @transform_5(%arg0: i32) -> (i32, i32) {
    %c0_i32 = arith.constant 0 : i32
    %c0_i32_0 = arith.constant 0 : i32
    %c0_i32_1 = arith.constant 0 : i32
    return %c0_i32, %c0_i32_0 : i32, i32
  }
  func.func @transform_6(%arg0: i32) -> (i32, i32) {
    %c0_i32 = arith.constant 0 : i32
    %c0_i32_0 = arith.constant 0 : i32
    %c0_i32_1 = arith.constant 0 : i32
    return %c0_i32, %c0_i32_0 : i32, i32
  }
  func.func @transform_7(%arg0: i32) -> (i32, i32) {
    %c0_i32 = arith.constant 0 : i32
    %c0_i32_0 = arith.constant 0 : i32
    %c0_i32_1 = arith.constant 0 : i32
    return %c0_i32, %c0_i32_0 : i32, i32
  }
  func.func @transform_8(%arg0: i32) -> (i32, i32) {
    %c0_i32 = arith.constant 0 : i32
    %c0_i32_0 = arith.constant 0 : i32
    return %c0_i32, %arg0 : i32, i32
  }
}

</mosaic_0001>

<llo_original>
// kernel: tpu_custom_call.1
$region0: #{tpu_custom_call.1}
  #allocation0 [shape = 'u32[]', space=smem, size = 0x4, offset = 0x4, fixed_abs, tag = 'smem constant byte address 0x4 - core index']
  #allocation1 [shape = 'u32[144,128]{1,0:T(1,128)}', space=vmem, size = 0x12000, scoped, tag = 'internal scratch']
  #allocation2 [shape = 'f32[24,128]{1,0:T(8,128)}', space=vmem, size = 0x3000, scoped, tag = 'scratch operand']
  %s0 = inlined_call_operand.vmem [shape: f32[25,256], index: 0, kind: input, shape index: {}]
  %s1 = inlined_call_operand.vmem [shape: f32[32,25], index: 1, kind: input, shape index: {}]
  %s2 = inlined_call_operand.vmem [shape: f32[32,24], index: 2, kind: input, shape index: {}]
  %s3 = inlined_call_operand.vmem [shape: f32[32,1], index: 3, kind: input, shape index: {}]
  %s4 = inlined_call_operand.vmem [shape: f32[32,32], index: 4, kind: input, shape index: {}]
  %s5 = inlined_call_operand.vmem [shape: f32[32,1], index: 5, kind: input, shape index: {}]
  %s6 = inlined_call_operand.vmem [shape: f32[3,32], index: 6, kind: input, shape index: {}]
  %s7 = inlined_call_operand.vmem [shape: f32[3,1], index: 7, kind: input, shape index: {}]
  %s8 = inlined_call_operand.hbm [shape: f32[3,256], index: 8, kind: output, shape index: {}]
  %s9 = sld [smem:[#allocation0]]
  $region103: #{tpu_custom_call.1} parent=0
    _
  %s11 = ssub.s32 1, %s9
  %s12 = scalar_select 0, %s11, %s9
  $region1: #{tpu_custom_call.1} parent=0
    #allocation3 [shape = 'u8[32768]{0}', space=vmem, size = 0x8000, scoped, tag = 'input window, operand 0']
    #allocation4 [shape = 'u8[4096]{0}', space=vmem, size = 0x1000, scoped, tag = 'output window, operand 0']
    #allocation5 [shape = 's32[2]{0}', space=sflag, size = 0x8, scoped, tag = 'scoped memory for tpu_custom_call.1']
    %13 = vsyncpa [#allocation5], 0
    %s14 = scalar_lea.sflag [#allocation5], 1
    %15 = vsyncpa %s14, 0
    loop: start=0, step=1, limit=4
    $region2: #{tpu_custom_call.1} parent=1 // loop_pre_header
      _
    $region3: #{tpu_custom_call.1} parent=1 // loop_header
      %s17 = sphi 0, %s21
      %p18 = scmp.ge.s32.totalorder %s17, 4
      %s27 = sphi 0, %s29
      %s30 = sphi 0, %s27
      %s31 = sphi 0, %s30
      %s47 = sphi 0, %s31
      %s51 = sphi 0, %s51
      %s53 = sphi 0, %s51
      %s54 = sphi 0, %s53
      %s68 = sphi 0, %s54
      %s72 = sphi 0, %s72
      %s74 = sphi 0, %s72
      %s75 = sphi 0, %s74
      %s89 = sphi 0, %s75
      %s93 = sphi 0, %s93
      %s95 = sphi 0, %s93
      %s96 = sphi 0, %s95
      %s110 = sphi 0, %s96
      %s114 = sphi 0, %s114
      %s116 = sphi 0, %s114
      %s117 = sphi 0, %s116
      %s131 = sphi 0, %s117
      %s135 = sphi 0, %s135
      %s137 = sphi 0, %s135
      %s138 = sphi 0, %s137
      %s152 = sphi 0, %s138
      %s156 = sphi 0, %s156
      %s158 = sphi 0, %s156
      %s159 = sphi 0, %s158
      %s173 = sphi 0, %s159
      %s177 = sphi 0, %s177
      %s179 = sphi 0, %s177
      %s180 = sphi 0, %s179
      %s194 = sphi 0, %s180
      %s200 = sphi 0, %s202
      %s203 = sphi 0, %s200
      %s204 = sphi 0, %s203
      %s220 = sphi 0, %s204
    $region4: #{tpu_custom_call.1} parent=1 // loop_header_branch
      %20 = sbr.rel (%p18) target = $region8
    $region5: #{tpu_custom_call.1} parent=1 // loop_body
      %s22 = ssub.s32 %s17, 1
      %s23 = ssub.s32 %s17, 2
      %s24 = sadd.s32 %s17, 1
      %s25 = ssub.s32 %s17, %s24
      %p26 = scmp.eq.s32.totalorder %s25, 0
      %s28 = sadd.s32 %s27, 1
      %s29 = scalar_select %p26, %s27, %s28
      %p32 = pneg %p26
      %p33 = scmp.eq.s32.totalorder %s17, 1
      %p34 = por %p32, %p33
      %p35 = scmp.ne.s32.totalorder %s27, %s30
      %p36 = scmp.eq.s32.totalorder %s17, 0
      %p37 = por %p35, %p36
      %p38 = scmp.ne.s32.totalorder %s27, %s30
      %p39 = scmp.eq.s32.totalorder %s22, 1
      %p40 = por %p38, %p39
      %p41 = scmp.ne.s32.totalorder %s30, %s31
      %p42 = scmp.eq.s32.totalorder %s22, 0
      %p43 = por %p41, %p42
      %p44 = scmp.ne.s32.totalorder %s30, %s31
      %p45 = scmp.eq.s32.totalorder %s23, 1
      %p46 = por %p44, %p45
      %p48 = scmp.ne.s32.totalorder %s31, %s47
      %p49 = scmp.eq.s32.totalorder %s23, 0
      %p50 = por %p48, %p49
      %s52 = sadd.s32 %s51, 1
      %p55 = scmp.eq.s32.totalorder %s17, 1
      %p56 = scmp.ne.s32.totalorder %s51, %s53
      %p57 = scmp.eq.s32.totalorder %s17, 0
      %p58 = por %p56, %p57
      %p59 = scmp.ne.s32.totalorder %s51, %s53
      %p60 = scmp.eq.s32.totalorder %s22, 1
      %p61 = por %p59, %p60
      %p62 = scmp.ne.s32.totalorder %s53, %s54
      %p63 = scmp.eq.s32.totalorder %s22, 0
      %p64 = por %p62, %p63
      %p65 = scmp.ne.s32.totalorder %s53, %s54
      %p66 = scmp.eq.s32.totalorder %s23, 1
      %p67 = por %p65, %p66
      %p69 = scmp.ne.s32.totalorder %s54, %s68
      %p70 = scmp.eq.s32.totalorder %s23, 0
      %p71 = por %p69, %p70
      %s73 = sadd.s32 %s72, 1
      %p76 = scmp.eq.s32.totalorder %s17, 1
      %p77 = scmp.ne.s32.totalorder %s72, %s74
      %p78 = scmp.eq.s32.totalorder %s17, 0
      %p79 = por %p77, %p78
      %p80 = scmp.ne.s32.totalorder %s72, %s74
      %p81 = scmp.eq.s32.totalorder %s22, 1
      %p82 = por %p80, %p81
      %p83 = scmp.ne.s32.totalorder %s74, %s75
      %p84 = scmp.eq.s32.totalorder %s22, 0
      %p85 = por %p83, %p84
      %p86 = scmp.ne.s32.totalorder %s74, %s75
      %p87 = scmp.eq.s32.totalorder %s23, 1
      %p88 = por %p86, %p87
      %p90 = scmp.ne.s32.totalorder %s75, %s89
      %p91 = scmp.eq.s32.totalorder %s23, 0
      %p92 = por %p90, %p91
      %s94 = sadd.s32 %s93, 1
      %p97 = scmp.eq.s32.totalorder %s17, 1
      %p98 = scmp.ne.s32.totalorder %s93, %s95
      %p99 = scmp.eq.s32.totalorder %s17, 0
      %p100 = por %p98, %p99
      %p101 = scmp.ne.s32.totalorder %s93, %s95
      %p102 = scmp.eq.s32.totalorder %s22, 1
      %p103 = por %p101, %p102
      %p104 = scmp.ne.s32.totalorder %s95, %s96
      %p105 = scmp.eq.s32.totalorder %s22, 0
      %p106 = por %p104, %p105
      %p107 = scmp.ne.s32.totalorder %s95, %s96
      %p108 = scmp.eq.s32.totalorder %s23, 1
      %p109 = por %p107, %p108
      %p111 = scmp.ne.s32.totalorder %s96, %s110
      %p112 = scmp.eq.s32.totalorder %s23, 0
      %p113 = por %p111, %p112
      %s115 = sadd.s32 %s114, 1
      %p118 = scmp.eq.s32.totalorder %s17, 1
      %p119 = scmp.ne.s32.totalorder %s114, %s116
      %p120 = scmp.eq.s32.totalorder %s17, 0
      %p121 = por %p119, %p120
      %p122 = scmp.ne.s32.totalorder %s114, %s116
      %p123 = scmp.eq.s32.totalorder %s22, 1
      %p124 = por %p122, %p123
      %p125 = scmp.ne.s32.totalorder %s116, %s117
      %p126 = scmp.eq.s32.totalorder %s22, 0
      %p127 = por %p125, %p126
      %p128 = scmp.ne.s32.totalorder %s116, %s117
      %p129 = scmp.eq.s32.totalorder %s23, 1
      %p130 = por %p128, %p129
      %p132 = scmp.ne.s32.totalorder %s117, %s131
      %p133 = scmp.eq.s32.totalorder %s23, 0
      %p134 = por %p132, %p133
      %s136 = sadd.s32 %s135, 1
      %p139 = scmp.eq.s32.totalorder %s17, 1
      %p140 = scmp.ne.s32.totalorder %s135, %s137
      %p141 = scmp.eq.s32.totalorder %s17, 0
      %p142 = por %p140, %p141
      %p143 = scmp.ne.s32.totalorder %s135, %s137
      %p144 = scmp.eq.s32.totalorder %s22, 1
      %p145 = por %p143, %p144
      %p146 = scmp.ne.s32.totalorder %s137, %s138
      %p147 = scmp.eq.s32.totalorder %s22, 0
      %p148 = por %p146, %p147
      %p149 = scmp.ne.s32.totalorder %s137, %s138
      %p150 = scmp.eq.s32.totalorder %s23, 1
      %p151 = por %p149, %p150
      %p153 = scmp.ne.s32.totalorder %s138, %s152
      %p154 = scmp.eq.s32.totalorder %s23, 0
      %p155 = por %p153, %p154
      %s157 = sadd.s32 %s156, 1
      %p160 = scmp.eq.s32.totalorder %s17, 1
      %p161 = scmp.ne.s32.totalorder %s156, %s158
      %p162 = scmp.eq.s32.totalorder %s17, 0
      %p163 = por %p161, %p162
      %p164 = scmp.ne.s32.totalorder %s156, %s158
      %p165 = scmp.eq.s32.totalorder %s22, 1
      %p166 = por %p164, %p165
      %p167 = scmp.ne.s32.totalorder %s158, %s159
      %p168 = scmp.eq.s32.totalorder %s22, 0
      %p169 = por %p167, %p168
      %p170 = scmp.ne.s32.totalorder %s158, %s159
      %p171 = scmp.eq.s32.totalorder %s23, 1
      %p172 = por %p170, %p171
      %p174 = scmp.ne.s32.totalorder %s159, %s173
      %p175 = scmp.eq.s32.totalorder %s23, 0
      %p176 = por %p174, %p175
      %s178 = sadd.s32 %s177, 1
      %p181 = scmp.eq.s32.totalorder %s17, 1
      %p182 = scmp.ne.s32.totalorder %s177, %s179
      %p183 = scmp.eq.s32.totalorder %s17, 0
      %p184 = por %p182, %p183
      %p185 = scmp.ne.s32.totalorder %s177, %s179
      %p186 = scmp.eq.s32.totalorder %s22, 1
      %p187 = por %p185, %p186
      %p188 = scmp.ne.s32.totalorder %s179, %s180
      %p189 = scmp.eq.s32.totalorder %s22, 0
      %p190 = por %p188, %p189
      %p191 = scmp.ne.s32.totalorder %s179, %s180
      %p192 = scmp.eq.s32.totalorder %s23, 1
      %p193 = por %p191, %p192
      %p195 = scmp.ne.s32.totalorder %s180, %s194
      %p196 = scmp.eq.s32.totalorder %s23, 0
      %p197 = por %p195, %p196
      %s198 = ssub.s32 %s17, %s24
      %p199 = scmp.eq.s32.totalorder %s198, 0
      %s201 = sadd.s32 %s200, 1
      %s202 = scalar_select %p199, %s200, %s201
      %p205 = pneg %p199
      %p206 = scmp.eq.s32.totalorder %s17, 1
      %p207 = por %p205, %p206
      %p208 = scmp.ne.s32.totalorder %s200, %s203
      %p209 = scmp.eq.s32.totalorder %s17, 0
      %p210 = por %p208, %p209
      %p211 = scmp.ne.s32.totalorder %s200, %s203
      %p212 = scmp.eq.s32.totalorder %s22, 1
      %p213 = por %p211, %p212
      %p214 = scmp.ne.s32.totalorder %s203, %s204
      %p215 = scmp.eq.s32.totalorder %s22, 0
      %p216 = por %p214, %p215
      %p217 = scmp.ne.s32.totalorder %s203, %s204
      %p218 = scmp.eq.s32.totalorder %s23, 1
      %p219 = por %p217, %p218
      %p221 = scmp.ne.s32.totalorder %s204, %s220
      %p222 = scmp.eq.s32.totalorder %s23, 0
      %p223 = por %p221, %p222
      %p224 = scmp.le.s32.totalorder 1, %s17
      %p225 = scmp.lt.s32.totalorder %s17, 3
      %p226 = pnand %p224, %p225
      %p227 = pneg %p226
      // Predicated region
      $region9: #{tpu_custom_call.1} parent=5 // pred_check
        _
      $region10: #{tpu_custom_call.1} parent=5 // pred_check_branch
        %229 = sbr.rel (%p226) target = $region12
      $region11: #{tpu_custom_call.1} parent=5 // pred_region
        %s230 = ssub.s32 %s17, 1
        // Predicated region
        $region13: #{tpu_custom_call.1} parent=11 // pred_check
          %p231 = pneg %p64
        $region14: #{tpu_custom_call.1} parent=11 // pred_check_branch
          %233 = sbr.rel (%p231) target = $region16
        $region15: #{tpu_custom_call.1} parent=11 // pred_region
          _
        $region16: #{tpu_custom_call.1} parent=11 // pred_fallthru
          _
        // Predicated region
        $region17: #{tpu_custom_call.1} parent=11 // pred_check
          %p234 = pneg %p85
        $region18: #{tpu_custom_call.1} parent=11 // pred_check_branch
          %236 = sbr.rel (%p234) target = $region20
        $region19: #{tpu_custom_call.1} parent=11 // pred_region
          _
        $region20: #{tpu_custom_call.1} parent=11 // pred_fallthru
          _
        // Predicated region
        $region21: #{tpu_custom_call.1} parent=11 // pred_check
          %p237 = pneg %p106
        $region22: #{tpu_custom_call.1} parent=11 // pred_check_branch
          %239 = sbr.rel (%p237) target = $region24
        $region23: #{tpu_custom_call.1} parent=11 // pred_region
          _
        $region24: #{tpu_custom_call.1} parent=11 // pred_fallthru
          _
        // Predicated region
        $region25: #{tpu_custom_call.1} parent=11 // pred_check
          %p240 = pneg %p127
        $region26: #{tpu_custom_call.1} parent=11 // pred_check_branch
          %242 = sbr.rel (%p240) target = $region28
        $region27: #{tpu_custom_call.1} parent=11 // pred_region
          _
        $region28: #{tpu_custom_call.1} parent=11 // pred_fallthru
          _
        // Predicated region
        $region29: #{tpu_custom_call.1} parent=11 // pred_check
          %p243 = pneg %p148
        $region30: #{tpu_custom_call.1} parent=11 // pred_check_branch
          %245 = sbr.rel (%p243) target = $region32
        $region31: #{tpu_custom_call.1} parent=11 // pred_region
          _
        $region32: #{tpu_custom_call.1} parent=11 // pred_fallthru
          _
        // Predicated region
        $region33: #{tpu_custom_call.1} parent=11 // pred_check
          %p246 = pneg %p169
        $region34: #{tpu_custom_call.1} parent=11 // pred_check_branch
          %248 = sbr.rel (%p246) target = $region36
        $region35: #{tpu_custom_call.1} parent=11 // pred_region
          _
        $region36: #{tpu_custom_call.1} parent=11 // pred_fallthru
          _
        // Predicated region
        $region37: #{tpu_custom_call.1} parent=11 // pred_check
          %p249 = pneg %p190
        $region38: #{tpu_custom_call.1} parent=11 // pred_check_branch
          %251 = sbr.rel (%p249) target = $region40
        $region39: #{tpu_custom_call.1} parent=11 // pred_region
          _
        $region40: #{tpu_custom_call.1} parent=11 // pred_fallthru
          _
      $region12: #{tpu_custom_call.1} parent=5 // pred_fallthru
        _
      %p252 = scmp.lt.s32.totalorder %s17, 2
      // Predicated region
      $region41: #{tpu_custom_call.1} parent=5 // pred_check
        %p253 = pneg %p252
      $region42: #{tpu_custom_call.1} parent=5 // pred_check_branch
        %255 = sbr.rel (%p253) target = $region44
      $region43: #{tpu_custom_call.1} parent=5 // pred_region
        // Predicated region
        $region45: #{tpu_custom_call.1} parent=43 // pred_check
          %p256 = pneg %p37
        $region46: #{tpu_custom_call.1} parent=43 // pred_check_branch
          %258 = sbr.rel (%p256) target = $region48
        $region47: #{tpu_custom_call.1} parent=43 // pred_region
          %s259 = sand.u32 %s27, 1
          %s260 = sand.u32 %s27, 1
          %s261 = smul.addr %s260, 32
          %s262 = scalar_lea.vmem [#allocation3], %s261
          %s263 = smul.addr %s17, 8
          %s264 = scalar_lea.vmem %s0, %s263
          // Predicated region
          $region49: #{tpu_custom_call.1} parent=47 // pred_check
            _
          $region50: #{tpu_custom_call.1} parent=47 // pred_check_branch
            %266 = sbr.rel (0) target = $region52
          $region51: #{tpu_custom_call.1} parent=47 // pred_region
            // Predicated region
            $region53: #{tpu_custom_call.1} parent=51 // pred_check
              _
            $region54: #{tpu_custom_call.1} parent=51 // pred_check_branch
              %268 = sbr.rel (0) target = $region56
            $region55: #{tpu_custom_call.1} parent=51 // pred_region
              // Predicated region
              $region68: #{tpu_custom_call.1} parent=55 // pred_check
                _
              $region69: #{tpu_custom_call.1} parent=55 // pred_check_branch
                %289 = sbr.rel (0) target = $region71
              $region70: #{tpu_custom_call.1} parent=55 // pred_region
                loop: start=0, step=1, limit=1
                $region72: #{tpu_custom_call.1} parent=70 // loop_pre_header
                  _
                $region73: #{tpu_custom_call.1} parent=70 // loop_header
                  %s291 = sphi 0, %s295
                  %p292 = scmp.ge.s32.totalorder %s291, 1
                  %s296 = sphi %s264, %s264
                  %s297 = sphi %s262, %s262
                $region74: #{tpu_custom_call.1} parent=70 // loop_header_branch
                  %294 = sbr.rel (%p292) target = $region78
                $region75: #{tpu_custom_call.1} parent=70 // loop_body
                  %v298 = vld [vmem:[%s296] sm:$0xff]
                  %299 = vst [vmem:[%s297] sm:$0xff] %v298
                  %v300 = vld [vmem:[%s296 + $0x10] sm:$0xff]
                  %301 = vst [vmem:[%s297 + $0x8] sm:$0xff] %v300
                  %v302 = vld [vmem:[%s296 + $0x20] sm:$0xff]
                  %303 = vst [vmem:[%s297 + $0x10] sm:$0xff] %v302
                  %v304 = vld [vmem:[%s296 + $0x30] sm:$0xff]
                  %305 = vst [vmem:[%s297 + $0x18] sm:$0xff] %v304
                $region76: #{tpu_custom_call.1} parent=70 // loop_footer
                  %s295 = sadd.s32 1, %s291
                $region77: #{tpu_custom_call.1} parent=70 // loop_footer_branch
                  %290 = sbr.rel target = $region73
                $region78: #{tpu_custom_call.1} parent=70 // loop_exit
                  _
              $region71: #{tpu_custom_call.1} parent=55 // pred_fallthru
                _
              // Predicated region
              $region79: #{tpu_custom_call.1} parent=55 // pred_check
                _
              $region80: #{tpu_custom_call.1} parent=55 // pred_check_branch
                %307 = sbr.rel target = $region82
              $region81: #{tpu_custom_call.1} parent=55 // pred_region
                _
              $region82: #{tpu_custom_call.1} parent=55 // pred_fallthru
                _
            $region56: #{tpu_custom_call.1} parent=51 // pred_fallthru
              _
            // Predicated region
            $region57: #{tpu_custom_call.1} parent=51 // pred_check
              _
            $region58: #{tpu_custom_call.1} parent=51 // pred_check_branch
              %270 = sbr.rel target = $region60
            $region59: #{tpu_custom_call.1} parent=51 // pred_region
              loop: start=0, step=1, limit=1
              $region61: #{tpu_custom_call.1} parent=59 // loop_pre_header
                _
              $region62: #{tpu_custom_call.1} parent=59 // loop_header
                %s273 = sphi 0, %s277
                %p274 = scmp.ge.s32.totalorder %s273, 1
                %s278 = sphi %s264, %s264
                %s279 = sphi %s262, %s262
              $region63: #{tpu_custom_call.1} parent=59 // loop_header_branch
                %276 = sbr.rel (%p274) target = $region67
              $region64: #{tpu_custom_call.1} parent=59 // loop_body
                %v280 = vld [vmem:[%s278] sm:$0xff]
                %281 = vst [vmem:[%s279] sm:$0xff] %v280
                %v282 = vld [vmem:[%s278 + $0x10] sm:$0xff]
                %283 = vst [vmem:[%s279 + $0x8] sm:$0xff] %v282
                %v284 = vld [vmem:[%s278 + $0x20] sm:$0xff]
                %285 = vst [vmem:[%s279 + $0x10] sm:$0xff] %v284
                %v286 = vld [vmem:[%s278 + $0x30] sm:$0xff]
                %287 = vst [vmem:[%s279 + $0x18] sm:$0xff] %v286
              $region65: #{tpu_custom_call.1} parent=59 // loop_footer
                %s277 = sadd.s32 1, %s273
              $region66: #{tpu_custom_call.1} parent=59 // loop_footer_branch
                %272 = sbr.rel target = $region62
              $region67: #{tpu_custom_call.1} parent=59 // loop_exit
                _
            $region60: #{tpu_custom_call.1} parent=51 // pred_fallthru
              _
          $region52: #{tpu_custom_call.1} parent=47 // pred_fallthru
            _
          %308 = vnop
        $region48: #{tpu_custom_call.1} parent=43 // pred_fallthru
          _
      $region44: #{tpu_custom_call.1} parent=5 // pred_fallthru
        _
      %p309 = scmp.le.s32.totalorder 1, %s17
      %p310 = scmp.lt.s32.totalorder %s17, 3
      %p311 = pnand %p309, %p310
      %p312 = pneg %p311
      // Predicated region
      $region83: #{tpu_custom_call.1} parent=5 // pred_check
        _
      $region84: #{tpu_custom_call.1} parent=5 // pred_check_branch
        %314 = sbr.rel (%p311) target = $region86
      $region85: #{tpu_custom_call.1} parent=5 // pred_region
        %s315 = ssub.s32 %s17, 1
        %s316 = sand.u32 %s30, 1
        %s317 = sand.u32 %s30, 1
        %s318 = smul.addr %s317, 32
        %s319 = scalar_lea.vmem [#allocation3], %s318
        // Predicated region
        $region87: #{tpu_custom_call.1} parent=85 // pred_check
          %p320 = pneg %p43
        $region88: #{tpu_custom_call.1} parent=85 // pred_check_branch
          %322 = sbr.rel (%p320) target = $region90
        $region89: #{tpu_custom_call.1} parent=85 // pred_region
          _
        $region90: #{tpu_custom_call.1} parent=85 // pred_fallthru
          _
        %s323 = sand.u32 %s30, 1
        %s324 = sand.u32 %s30, 1
        %s325 = smul.addr %s324, 32
        %s326 = scalar_lea.vmem [#allocation3], %s325
        %p327 = pneg %p43
        %p328 = pneg %p40
        %p329 = pneg %p64
        %p330 = pneg %p61
        %p331 = pneg %p85
        %p332 = pneg %p82
        %p333 = pneg %p106
        %p334 = pneg %p103
        %p335 = pneg %p127
        %p336 = pneg %p124
        %p337 = pneg %p148
        %p338 = pneg %p145
        %p339 = pneg %p169
        %p340 = pneg %p166
        %p341 = pneg %p190
        %p342 = pneg %p187
        %p343 = pneg %p216
        %p344 = pneg %p213
        %s345 = sand.u32 %s203, 1
        %s346 = scalar_lea.sflag [#allocation5], %s345
        %s347 = sand.u32 %s203, 1
        %s348 = smul.addr %s347, 4
        %s349 = scalar_lea.vmem [#allocation4], %s348
        %v350 = vld [vmem:[%s319 + $0x3] sm:$0x7]
        %v351 = vand.u32 2147483647, %v350
        %vm352 = vcmp.le.f32.partialorder %v351, 0.7853982
        %vm353 = vcmp.lt.s32.totalorder %v350, 0
        %v354 = vand.u32 %v350, 2139095040
        %v355 = vshrl.u32 %v354, 23
        %v356 = vsub.s32 %v355, 127
        %v357 = vand.u32 2147483647, %v350
        %v358 = vand.u32 %v357, 8388607
        %v359 = vor.u32 %v358, 8388608
        %v360 = vsub.s32 0, %v359
        %v361 = vadd.s32 %v356, 1
        %vm362 = vcmp.gt.s32.totalorder %v361, 0
        %v363 = vsel %vm362, %v361, 0
        %v364 = vshrl.u32 %v363, 5
        %v365 = vand.u32 %v363, 31
        %v366 = vsub.s32 32, %v365
        %v367 = vshrl.u32 683565275, %v366
        %v368 = vshll.u32 683565275, %v365
        %v369 = vshrl.u32 2475754826, %v366
        %v370 = vor.u32 %v368, %v369
        %v371 = vshll.u32 2475754826, %v365
        %v372 = vshrl.u32 2131351028, %v366
        %v373 = vor.u32 %v371, %v372
        %v374 = vshll.u32 2131351028, %v365
        %v375 = vshrl.u32 2102212464, %v366
        %v376 = vor.u32 %v374, %v375
        %v377 = vshll.u32 2102212464, %v365
        %v378 = vshrl.u32 920167782, %v366
        %v379 = vor.u32 %v377, %v378
        %v380 = vshll.u32 920167782, %v365
        %v381 = vshrl.u32 1326507024, %v366
        %v382 = vor.u32 %v380, %v381
        %vm383 = vcmp.lt.s32.totalorder %v364, 1
        %vm384 = vcmp.lt.s32.totalorder %v364, 2
        %vm385 = vcmp.lt.s32.totalorder %v364, 3
        %vm386 = vcmp.lt.s32.totalorder %v364, 4
        %v387 = vsel %vm383, %v367, %v370
        %v388 = vsel %vm386, %v376, 2102212464
        %v389 = vsel %vm385, %v373, %v388
        %v390 = vsel %vm384, %v387, %v389
        %v391 = vsel %vm383, %v370, %v373
        %v392 = vsel %vm386, %v379, 920167782
        %v393 = vsel %vm385, %v376, %v392
        %v394 = vsel %vm384, %v391, %v393
        %v395 = vsel %vm383, %v373, %v376
        %v396 = vsel %vm386, %v382, 1326507024
        %v397 = vsel %vm385, %v379, %v396
        %v398 = vsel %vm384, %v395, %v397
        %v399 = vshll.u32 %v359, 8
        %v400 = vmul.u32.u64.compose %v399, %v398
        %v401 = vextract.low.u32 %v400
        %v402 = vextract.high.u32 %v400
        %v403 = vmul.u32.u64.compose %v399, %v394
        %v404 = vextract.low.u32 %v403
        %v405 = vextract.high.u32 %v403
        %v406 = vmul.u32 %v399, %v390
        %v407 = vadd.s32 %v402, %v404
        %vm408 = vc.u32 %v402, %v404
        %v409 = vadd.s32 %v405, 1
        %v410 = vsel %vm408, %v409, %v405
        %v411 = vadd.s32 %v406, %v410
        %v412 = vadd.s32 %v411, 536870912
        %v413 = vshrl.u32 %v412, 30
        %v414 = vshll.u32 %v413, 30
        %v415 = vsub.s32 %v411, %v414
        %vm416 = vcmp.lt.s32.totalorder %v415, 0
        %v417 = vsub.s32 0, %v415
        %v418 = vsel %vm416, %v417, %v415
        %v419 = vclz %v418
        %v420 = vsub.s32 %v419, 2
        %vm421 = vcmp.gt.s32.totalorder 0, %v420
        %v422 = vsel %vm421, 0, %v420
        %v423 = vsub.s32 32, %v422
        %v424 = vshll.u32 %v415, %v422
        %v425 = vshrl.u32 %v407, %v423
        %v426 = vor.u32 %v424, %v425
        %v427 = vsub.s32 4294967266, %v422
        %v428 = vadd.s32 %v427, 127
        %v429 = vshll.u32 %v428, 23
        %v430 = vor.u32 4788187, %v429
        %v431 = vand.u32 2147483647, %v430
        %v433 = vcvt.s32.f32 %v426
        %v434 = vmul.f32 %v433, %v431
        %v435 = vxor.u32 %v434, 2147483648
        %v436 = vsel %vm353, %v435, %v434
        %v437 = vsub.s32 4, %v413
        %v438 = vsel %vm353, %v437, %v413
        %v439 = vsel %vm352, %v350, %v436
        %v440 = vsel %vm352, 0, %v438
        %v441 = vcosq.f32.pop %v439
        %v442 = vsinq.f32.pop %v439
        %vm443 = vweird.f32 %v350
        %v444 = vadd.s32 %v440, 3
        %v445 = vand.u32 %v444, 3
        %vm446 = vcmp.lt.s32.totalorder %v445, 2
        %vm447 = vcmp.eq.s32.totalorder %v445, 0
        %v448 = vxor.u32 %v442, 2147483648
        %v449 = vsel %vm447, %v441, %v448
        %vm450 = vcmp.eq.s32.totalorder %v445, 2
        %v451 = vxor.u32 %v441, 2147483648
        %v452 = vsel %vm450, %v451, %v442
        %v453 = vsel %vm446, %v449, %v452
        %v454 = vsel %vm443, nan, %v453
        %v455 = vand.u32 2147483647, %v350
        %vm456 = vcmp.le.f32.partialorder %v455, 0.7853982
        %vm457 = vcmp.lt.s32.totalorder %v350, 0
        %v458 = vand.u32 %v350, 2139095040
        %v459 = vshrl.u32 %v458, 23
        %v460 = vsub.s32 %v459, 127
        %v461 = vand.u32 2147483647, %v350
        %v462 = vand.u32 %v461, 8388607
        %v463 = vor.u32 %v462, 8388608
        %v464 = vsub.s32 0, %v463
        %v465 = vadd.s32 %v460, 1
        %vm466 = vcmp.gt.s32.totalorder %v465, 0
        %v467 = vsel %vm466, %v465, 0
        %v468 = vshrl.u32 %v467, 5
        %v469 = vand.u32 %v467, 31
        %v470 = vsub.s32 32, %v469
        %v471 = vshrl.u32 683565275, %v470
        %v472 = vshll.u32 683565275, %v469
        %v473 = vshrl.u32 2475754826, %v470
        %v474 = vor.u32 %v472, %v473
        %v475 = vshll.u32 2475754826, %v469
        %v476 = vshrl.u32 2131351028, %v470
        %v477 = vor.u32 %v475, %v476
        %v478 = vshll.u32 2131351028, %v469
        %v479 = vshrl.u32 2102212464, %v470
        %v480 = vor.u32 %v478, %v479
        %v481 = vshll.u32 2102212464, %v469
        %v482 = vshrl.u32 920167782, %v470
        %v483 = vor.u32 %v481, %v482
        %v484 = vshll.u32 920167782, %v469
        %v485 = vshrl.u32 1326507024, %v470
        %v486 = vor.u32 %v484, %v485
        %vm487 = vcmp.lt.s32.totalorder %v468, 1
        %vm488 = vcmp.lt.s32.totalorder %v468, 2
        %vm489 = vcmp.lt.s32.totalorder %v468, 3
        %vm490 = vcmp.lt.s32.totalorder %v468, 4
        %v491 = vsel %vm487, %v471, %v474
        %v492 = vsel %vm490, %v480, 2102212464
        %v493 = vsel %vm489, %v477, %v492
        %v494 = vsel %vm488, %v491, %v493
        %v495 = vsel %vm487, %v474, %v477
        %v496 = vsel %vm490, %v483, 920167782
        %v497 = vsel %vm489, %v480, %v496
        %v498 = vsel %vm488, %v495, %v497
        %v499 = vsel %vm487, %v477, %v480
        %v500 = vsel %vm490, %v486, 1326507024
        %v501 = vsel %vm489, %v483, %v500
        %v502 = vsel %vm488, %v499, %v501
        %v503 = vshll.u32 %v463, 8
        %v504 = vmul.u32.u64.compose %v503, %v502
        %v505 = vextract.low.u32 %v504
        %v506 = vextract.high.u32 %v504
        %v507 = vmul.u32.u64.compose %v503, %v498
        %v508 = vextract.low.u32 %v507
        %v509 = vextract.high.u32 %v507
        %v510 = vmul.u32 %v503, %v494
        %v511 = vadd.s32 %v506, %v508
        %vm512 = vc.u32 %v506, %v508
        %v513 = vadd.s32 %v509, 1
        %v514 = vsel %vm512, %v513, %v509
        %v515 = vadd.s32 %v510, %v514
        %v516 = vadd.s32 %v515, 536870912
        %v517 = vshrl.u32 %v516, 30
        %v518 = vshll.u32 %v517, 30
        %v519 = vsub.s32 %v515, %v518
        %vm520 = vcmp.lt.s32.totalorder %v519, 0
        %v521 = vsub.s32 0, %v519
        %v522 = vsel %vm520, %v521, %v519
        %v523 = vclz %v522
        %v524 = vsub.s32 %v523, 2
        %vm525 = vcmp.gt.s32.totalorder 0, %v524
        %v526 = vsel %vm525, 0, %v524
        %v527 = vsub.s32 32, %v526
        %v528 = vshll.u32 %v519, %v526
        %v529 = vshrl.u32 %v511, %v527
        %v530 = vor.u32 %v528, %v529
        %v531 = vsub.s32 4294967266, %v526
        %v532 = vadd.s32 %v531, 127
        %v533 = vshll.u32 %v532, 23
        %v534 = vor.u32 4788187, %v533
        %v535 = vand.u32 2147483647, %v534
        %v537 = vcvt.s32.f32 %v530
        %v538 = vmul.f32 %v537, %v535
        %v539 = vxor.u32 %v538, 2147483648
        %v540 = vsel %vm457, %v539, %v538
        %v541 = vsub.s32 4, %v517
        %v542 = vsel %vm457, %v541, %v517
        %v543 = vsel %vm456, %v350, %v540
        %v544 = vsel %vm456, 0, %v542
        %v545 = vcosq.f32.pop %v543
        %v546 = vsinq.f32.pop %v543
        %vm547 = vweird.f32 %v350
        %v548 = vand.u32 %v544, 3
        %vm549 = vcmp.lt.s32.totalorder %v548, 2
        %vm550 = vcmp.eq.s32.totalorder %v548, 0
        %v551 = vxor.u32 %v546, 2147483648
        %v552 = vsel %vm550, %v545, %v551
        %vm553 = vcmp.eq.s32.totalorder %v548, 2
        %v554 = vxor.u32 %v545, 2147483648
        %v555 = vsel %vm553, %v554, %v546
        %v556 = vsel %vm549, %v552, %v555
        %v557 = vsel %vm547, nan, %v556
        %558 = vst [vmem:[#allocation2] sm:$0x7] %v454
        %559 = vst [vmem:[#allocation2 + $0x3] sm:$0x7] %v557
        %v560 = vmul.f32 %v454, 2.0
        %v561 = vmul.f32 %v560, %v557
        %v562 = vmul.f32 %v560, %v454
        %v563 = vsub.f32 1.0, %v562
        %564 = vst [vmem:[#allocation2 + $0x6] sm:$0x7] %v561
        %565 = vst [vmem:[#allocation2 + $0x9] sm:$0x7] %v563
        %v566 = vmul.f32 %v561, 2.0
        %v567 = vmul.f32 %v566, %v563
        %v568 = vmul.f32 %v566, %v561
        %v569 = vsub.f32 1.0, %v568
        %570 = vst [vmem:[#allocation2 + $0xc] sm:$0x7] %v567
        %571 = vst [vmem:[#allocation2 + $0xf] sm:$0x7] %v569
        %v572 = vmul.f32 %v567, 2.0
        %v573 = vmul.f32 %v572, %v569
        %v574 = vmul.f32 %v572, %v567
        %v575 = vsub.f32 1.0, %v574
        %576 = vst [vmem:[#allocation2 + $0x12] sm:$0x7] %v573
        %577 = vst [vmem:[#allocation2 + $0x15] sm:$0x7] %v575
        %v578 = vld [vmem:[%s1] sm:$0xff]
        %v579 = vld [vmem:[%s1 + $0x8] sm:$0xff]
        %v580 = vld [vmem:[%s1 + $0x10] sm:$0xff]
        %v581 = vld [vmem:[%s1 + $0x18] sm:$0xff]
        %v582 = vld [vmem:[%s319] sm:$0xff]
        %v583 = vld [vmem:[%s319 + $0x8] sm:$0xff]
        %v584 = vld [vmem:[%s319 + $0x10] sm:$0xff]
        %v585 = vld [vmem:[%s319 + $0x18] sm:$0x1]
        %v586 = vld [vmem:[%s2] sm:$0xff]
        %v587 = vld [vmem:[%s2 + $0x8] sm:$0xff]
        %v588 = vld [vmem:[%s2 + $0x10] sm:$0xff]
        %v589 = vld [vmem:[%s2 + $0x18] sm:$0xff]
        %v590 = vld [vmem:[#allocation2] sm:$0xff]
        %v591 = vld [vmem:[#allocation2 + $0x8] sm:$0xff]
        %v592 = vld [vmem:[#allocation2 + $0x10] sm:$0xff]
        %vm593 = vcmask 195584
        %v595 = vsel %vm593, %v586, 0
        %v598 = vsel %vm593, %v587, 0
        %v601 = vsel %vm593, %v588, 0
        %v604 = vsel %vm593, %v589, 0
        %606 = vmatprep.subr.mxu0 0.0
        %607 = vmatpush1.msra.mxu0 %v590
        %608 = vmatprep.subr.mxu0 0.0
        %609 = vmatpush1.msra.mxu0 %v591
        %610 = vmatprep.subr.mxu0 0.0
        %611 = vmatpush1.msra.mxu0 %v592
        %612 = vmatprep.subr.mxu0 0.0
        %613 = vmatpush1.msra.mxu0 0.0
        %614 = vmatprep.subr.mxu0 0.0
        %615 = vmatpush1.msra.mxu0 0.0
        %616 = vmatprep.subr.mxu0 0.0
        %617 = vmatpush1.msra.mxu0 0.0
        %618 = vmatprep.subr.mxu0 0.0
        %619 = vmatpush1.msra.mxu0 0.0
        %620 = vmatprep.subr.mxu0 0.0
        %621 = vmatpush1.msra.mxu0 0.0
        %622 = vmatprep.subr.mxu0 0.0
        %623 = vmatpush1.msra.mxu0 0.0
        %624 = vmatprep.subr.mxu0 0.0
        %625 = vmatpush1.msra.mxu0 0.0
        %626 = vmatprep.subr.mxu0 0.0
        %627 = vmatpush1.msra.mxu0 0.0
        %628 = vmatprep.subr.mxu0 0.0
        %629 = vmatpush1.msra.mxu0 0.0
        %630 = vmatprep.subr.mxu0 0.0
        %631 = vmatpush1.msra.mxu0 0.0
        %632 = vmatprep.subr.mxu0 0.0
        %633 = vmatpush1.msra.mxu0 0.0
        %634 = vmatprep.subr.mxu0 0.0
        %635 = vmatpush1.msra.mxu0 0.0
        %636 = vmatprep.subr.mxu0 0.0
        %637 = vmatpush1.msra.mxu0 0.0
        %638 = vmatprep.subr.mxu0 0.0
        %639 = vmatpush1.msra.mxu0 0.0
        %640 = vmatprep.subr.mxu0 0.0
        %641 = vmatpush1.msra.mxu0 0.0
        %642 = vmatprep.subr.mxu0 0.0
        %643 = vmatpush1.msra.mxu0 0.0
        %644 = vmatprep.subr.mxu0 0.0
        %645 = vmatpush1.msra.mxu0 0.0
        %646 = vmatprep.subr.mxu0 0.0
        %647 = vmatpush1.msra.mxu0 0.0
        %648 = vmatprep.subr.mxu0 0.0
        %649 = vmatpush1.msra.mxu0 0.0
        %650 = vmatprep.subr.mxu0 0.0
        %651 = vmatpush1.msra.mxu0 0.0
        %652 = vmatprep.subr.mxu0 0.0
        %653 = vmatpush1.msra.mxu0 0.0
        %654 = vmatprep.subr.mxu0 0.0
        %655 = vmatpush1.msra.mxu0 0.0
        %656 = vmatprep.subr.mxu0 0.0
        %657 = vmatpush1.msra.mxu0 0.0
        %658 = vmatprep.subr.mxu0 0.0
        %659 = vmatpush1.msra.mxu0 0.0
        %660 = vmatprep.subr.mxu0 0.0
        %661 = vmatpush1.msra.mxu0 0.0
        %662 = vmatprep.subr.mxu0 0.0
        %663 = vmatpush1.msra.mxu0 0.0
        %664 = vmatprep.subr.mxu0 0.0
        %665 = vmatpush1.msra.mxu0 0.0
        %666 = vmatprep.subr.mxu0 0.0
        %667 = vmatpush1.msra.mxu0 0.0
        %668 = vmatprep.subr.mxu0 0.0
        %669 = vmatpush1.msra.mxu0 0.0
        %670 = vmatprep.mubr.f32.mxu0 0.0
        %671 = vmatmul.mubr.f32.gmra.mrb[0].mxu0 %v595
        %v672 = vpop.f32.mrb[0].mxu0
        %v673 = vadd.f32 0.0, %v672
        %v674 = vpop.f32.mrb[0].mxu0
        %675 = vmatprep.mubr.f32.mxu0 0.0
        %676 = vmatmul.mubr.f32.gmra.mrb[0].mxu0 %v598
        %v677 = vpop.f32.mrb[0].mxu0
        %v678 = vadd.f32 0.0, %v677
        %v679 = vpop.f32.mrb[0].mxu0
        %680 = vmatprep.mubr.f32.mxu0 0.0
        %681 = vmatmul.mubr.f32.gmra.mrb[0].mxu0 %v601
        %v682 = vpop.f32.mrb[0].mxu0
        %v683 = vadd.f32 0.0, %v682
        %v684 = vpop.f32.mrb[0].mxu0
        %685 = vmatprep.mubr.f32.mxu0 0.0
        %686 = vmatmul.mubr.f32.gmra.mrb[0].mxu0 %v604
        %v687 = vpop.f32.mrb[0].mxu0
        %v688 = vadd.f32 0.0, %v687
        %v689 = vpop.f32.mrb[0].mxu0
        %690 = vdwg.mxu0
        %vm691 = vcmask 203776
        %v693 = vsel %vm691, %v578, 0
        %v696 = vsel %vm691, %v579, 0
        %v699 = vsel %vm691, %v580, 0
        %v702 = vsel %vm691, %v581, 0
        %vm704 = vcmask 1040384
        %v706 = vsel %vm704, %v585, 0
        %708 = vmatprep.subr.mxu0 0.0
        %709 = vmatpush1.msra.mxu0 %v582
        %710 = vmatprep.subr.mxu0 0.0
        %711 = vmatpush1.msra.mxu0 %v583
        %712 = vmatprep.subr.mxu0 0.0
        %713 = vmatpush1.msra.mxu0 %v584
        %714 = vmatprep.subr.mxu0 0.0
        %715 = vmatpush1.msra.mxu0 %v706
        %716 = vmatprep.subr.mxu0 0.0
        %717 = vmatpush1.msra.mxu0 0.0
        %718 = vmatprep.subr.mxu0 0.0
        %719 = vmatpush1.msra.mxu0 0.0
        %720 = vmatprep.subr.mxu0 0.0
        %721 = vmatpush1.msra.mxu0 0.0
        %722 = vmatprep.subr.mxu0 0.0
        %723 = vmatpush1.msra.mxu0 0.0
        %724 = vmatprep.subr.mxu0 0.0
        %725 = vmatpush1.msra.mxu0 0.0
        %726 = vmatprep.subr.mxu0 0.0
        %727 = vmatpush1.msra.mxu0 0.0
        %728 = vmatprep.subr.mxu0 0.0
        %729 = vmatpush1.msra.mxu0 0.0
        %730 = vmatprep.subr.mxu0 0.0
        %731 = vmatpush1.msra.mxu0 0.0
        %732 = vmatprep.subr.mxu0 0.0
        %733 = vmatpush1.msra.mxu0 0.0
        %734 = vmatprep.subr.mxu0 0.0
        %735 = vmatpush1.msra.mxu0 0.0
        %736 = vmatprep.subr.mxu0 0.0
        %737 = vmatpush1.msra.mxu0 0.0
        %738 = vmatprep.subr.mxu0 0.0
        %739 = vmatpush1.msra.mxu0 0.0
        %740 = vmatprep.subr.mxu0 0.0
        %741 = vmatpush1.msra.mxu0 0.0
        %742 = vmatprep.subr.mxu0 0.0
        %743 = vmatpush1.msra.mxu0 0.0
        %744 = vmatprep.subr.mxu0 0.0
        %745 = vmatpush1.msra.mxu0 0.0
        %746 = vmatprep.subr.mxu0 0.0
        %747 = vmatpush1.msra.mxu0 0.0
        %748 = vmatprep.subr.mxu0 0.0
        %749 = vmatpush1.msra.mxu0 0.0
        %750 = vmatprep.subr.mxu0 0.0
        %751 = vmatpush1.msra.mxu0 0.0
        %752 = vmatprep.subr.mxu0 0.0
        %753 = vmatpush1.msra.mxu0 0.0
        %754 = vmatprep.subr.mxu0 0.0
        %755 = vmatpush1.msra.mxu0 0.0
        %756 = vmatprep.subr.mxu0 0.0
        %757 = vmatpush1.msra.mxu0 0.0
        %758 = vmatprep.subr.mxu0 0.0
        %759 = vmatpush1.msra.mxu0 0.0
        %760 = vmatprep.subr.mxu0 0.0
        %761 = vmatpush1.msra.mxu0 0.0
        %762 = vmatprep.subr.mxu0 0.0
        %763 = vmatpush1.msra.mxu0 0.0
        %764 = vmatprep.subr.mxu0 0.0
        %765 = vmatpush1.msra.mxu0 0.0
        %766 = vmatprep.subr.mxu0 0.0
        %767 = vmatpush1.msra.mxu0 0.0
        %768 = vmatprep.subr.mxu0 0.0
        %769 = vmatpush1.msra.mxu0 0.0
        %770 = vmatprep.subr.mxu0 0.0
        %771 = vmatpush1.msra.mxu0 0.0
        %772 = vmatprep.mubr.f32.mxu0 0.0
        %773 = vmatmul.mubr.f32.gmra.mrb[0].mxu0 %v693
        %v774 = vpop.f32.mrb[0].mxu0
        %v775 = vadd.f32 %v673, %v774
        %v776 = vpop.f32.mrb[0].mxu0
        %777 = vmatprep.mubr.f32.mxu0 0.0
        %778 = vmatmul.mubr.f32.gmra.mrb[0].mxu0 %v696
        %v779 = vpop.f32.mrb[0].mxu0
        %v780 = vadd.f32 %v678, %v779
        %v781 = vpop.f32.mrb[0].mxu0
        %782 = vmatprep.mubr.f32.mxu0 0.0
        %783 = vmatmul.mubr.f32.gmra.mrb[0].mxu0 %v699
        %v784 = vpop.f32.mrb[0].mxu0
        %v785 = vadd.f32 %v683, %v784
        %v786 = vpop.f32.mrb[0].mxu0
        %787 = vmatprep.mubr.f32.mxu0 0.0
        %788 = vmatmul.mubr.f32.gmra.mrb[0].mxu0 %v702
        %v789 = vpop.f32.mrb[0].mxu0
        %v790 = vadd.f32 %v688, %v789
        %v791 = vpop.f32.mrb[0].mxu0
        %792 = vdwg.mxu0
        %v793 = vld [vmem:[%s3] sm:$0xff]
        %v794 = vld [vmem:[%s3 + $0x8] sm:$0xff]
        %v795 = vld [vmem:[%s3 + $0x10] sm:$0xff]
        %v796 = vld [vmem:[%s3 + $0x18] sm:$0xff]
        %798 = vset.pattern.permute.xlu0 0
        %799 = vperm.xlu0 %798, %v793
        %v800 = vpop.permute.xlu0 %799
        %803 = vset.pattern.permute.xlu0 0
        %804 = vperm.xlu0 %803, %v794
        %v805 = vpop.permute.xlu0 %804
        %808 = vset.pattern.permute.xlu0 0
        %809 = vperm.xlu0 %808, %v795
        %v810 = vpop.permute.xlu0 %809
        %813 = vset.pattern.permute.xlu0 0
        %814 = vperm.xlu0 %813, %v796
        %v815 = vpop.permute.xlu0 %814
        %v817 = vadd.f32 %v775, %v800
        %v818 = vadd.f32 %v780, %v805
        %v819 = vadd.f32 %v785, %v810
        %v820 = vadd.f32 %v790, %v815
        %v821 = vmax.f32 %v817, 0.0
        %v822 = vmax.f32 %v818, 0.0
        %v823 = vmax.f32 %v819, 0.0
        %v824 = vmax.f32 %v820, 0.0
        %v825 = vld [vmem:[%s4] sm:$0xff]
        %v826 = vld [vmem:[%s4 + $0x8] sm:$0xff]
        %v827 = vld [vmem:[%s4 + $0x10] sm:$0xff]
        %v828 = vld [vmem:[%s4 + $0x18] sm:$0xff]
        %v829 = vld [vmem:[%s5] sm:$0xff]
        %v830 = vld [vmem:[%s5 + $0x8] sm:$0xff]
        %v831 = vld [vmem:[%s5 + $0x10] sm:$0xff]
        %v832 = vld [vmem:[%s5 + $0x18] sm:$0xff]
        %834 = vset.pattern.permute.xlu0 0
        %835 = vperm.xlu0 %834, %v829
        %v836 = vpop.permute.xlu0 %835
        %839 = vset.pattern.permute.xlu0 0
        %840 = vperm.xlu0 %839, %v830
        %v841 = vpop.permute.xlu0 %840
        %844 = vset.pattern.permute.xlu0 0
        %845 = vperm.xlu0 %844, %v831
        %v846 = vpop.permute.xlu0 %845
        %849 = vset.pattern.permute.xlu0 0
        %850 = vperm.xlu0 %849, %v832
        %v851 = vpop.permute.xlu0 %850
        %vm853 = vcmask 261120
        %v855 = vsel %vm853, %v825, 0
        %v858 = vsel %vm853, %v826, 0
        %v861 = vsel %vm853, %v827, 0
        %v864 = vsel %vm853, %v828, 0
        %866 = vmatprep.subr.mxu0 0.0
        %867 = vmatpush1.msra.mxu0 %v821
        %868 = vmatprep.subr.mxu0 0.0
        %869 = vmatpush1.msra.mxu0 %v822
        %870 = vmatprep.subr.mxu0 0.0
        %871 = vmatpush1.msra.mxu0 %v823
        %872 = vmatprep.subr.mxu0 0.0
        %873 = vmatpush1.msra.mxu0 %v824
        %874 = vmatprep.subr.mxu0 0.0
        %875 = vmatpush1.msra.mxu0 0.0
        %876 = vmatprep.subr.mxu0 0.0
        %877 = vmatpush1.msra.mxu0 0.0
        %878 = vmatprep.subr.mxu0 0.0
        %879 = vmatpush1.msra.mxu0 0.0
        %880 = vmatprep.subr.mxu0 0.0
        %881 = vmatpush1.msra.mxu0 0.0
        %882 = vmatprep.subr.mxu0 0.0
        %883 = vmatpush1.msra.mxu0 0.0
        %884 = vmatprep.subr.mxu0 0.0
        %885 = vmatpush1.msra.mxu0 0.0
        %886 = vmatprep.subr.mxu0 0.0
        %887 = vmatpush1.msra.mxu0 0.0
        %888 = vmatprep.subr.mxu0 0.0
        %889 = vmatpush1.msra.mxu0 0.0
        %890 = vmatprep.subr.mxu0 0.0
        %891 = vmatpush1.msra.mxu0 0.0
        %892 = vmatprep.subr.mxu0 0.0
        %893 = vmatpush1.msra.mxu0 0.0
        %894 = vmatprep.subr.mxu0 0.0
        %895 = vmatpush1.msra.mxu0 0.0
        %896 = vmatprep.subr.mxu0 0.0
        %897 = vmatpush1.msra.mxu0 0.0
        %898 = vmatprep.subr.mxu0 0.0
        %899 = vmatpush1.msra.mxu0 0.0
        %900 = vmatprep.subr.mxu0 0.0
        %901 = vmatpush1.msra.mxu0 0.0
        %902 = vmatprep.subr.mxu0 0.0
        %903 = vmatpush1.msra.mxu0 0.0
        %904 = vmatprep.subr.mxu0 0.0
        %905 = vmatpush1.msra.mxu0 0.0
        %906 = vmatprep.subr.mxu0 0.0
        %907 = vmatpush1.msra.mxu0 0.0
        %908 = vmatprep.subr.mxu0 0.0
        %909 = vmatpush1.msra.mxu0 0.0
        %910 = vmatprep.subr.mxu0 0.0
        %911 = vmatpush1.msra.mxu0 0.0
        %912 = vmatprep.subr.mxu0 0.0
        %913 = vmatpush1.msra.mxu0 0.0
        %914 = vmatprep.subr.mxu0 0.0
        %915 = vmatpush1.msra.mxu0 0.0
        %916 = vmatprep.subr.mxu0 0.0
        %917 = vmatpush1.msra.mxu0 0.0
        %918 = vmatprep.subr.mxu0 0.0
        %919 = vmatpush1.msra.mxu0 0.0
        %920 = vmatprep.subr.mxu0 0.0
        %921 = vmatpush1.msra.mxu0 0.0
        %922 = vmatprep.subr.mxu0 0.0
        %923 = vmatpush1.msra.mxu0 0.0
        %924 = vmatprep.subr.mxu0 0.0
        %925 = vmatpush1.msra.mxu0 0.0
        %926 = vmatprep.subr.mxu0 0.0
        %927 = vmatpush1.msra.mxu0 0.0
        %928 = vmatprep.subr.mxu0 0.0
        %929 = vmatpush1.msra.mxu0 0.0
        %930 = vmatprep.mubr.f32.mxu0 0.0
        %931 = vmatmul.mubr.f32.gmra.mrb[0].mxu0 %v855
        %v932 = vpop.f32.mrb[0].mxu0
        %v933 = vadd.f32 %v836, %v932
        %v934 = vpop.f32.mrb[0].mxu0
        %935 = vmatprep.mubr.f32.mxu0 0.0
        %936 = vmatmul.mubr.f32.gmra.mrb[0].mxu0 %v858
        %v937 = vpop.f32.mrb[0].mxu0
        %v938 = vadd.f32 %v841, %v937
        %v939 = vpop.f32.mrb[0].mxu0
        %940 = vmatprep.mubr.f32.mxu0 0.0
        %941 = vmatmul.mubr.f32.gmra.mrb[0].mxu0 %v861
        %v942 = vpop.f32.mrb[0].mxu0
        %v943 = vadd.f32 %v846, %v942
        %v944 = vpop.f32.mrb[0].mxu0
        %945 = vmatprep.mubr.f32.mxu0 0.0
        %946 = vmatmul.mubr.f32.gmra.mrb[0].mxu0 %v864
        %v947 = vpop.f32.mrb[0].mxu0
        %v948 = vadd.f32 %v851, %v947
        %v949 = vpop.f32.mrb[0].mxu0
        %950 = vdwg.mxu0
        %v951 = vmax.f32 %v933, 0.0
        %v952 = vmax.f32 %v938, 0.0
        %v953 = vmax.f32 %v943, 0.0
        %v954 = vmax.f32 %v948, 0.0
        %v955 = vld [vmem:[%s6] sm:$0x7]
        %v956 = vld [vmem:[%s7] sm:$0x7]
        %958 = vset.pattern.permute.xlu0 0
        %959 = vperm.xlu0 %958, %v956
        %v960 = vpop.permute.xlu0 %959
        %v963 = vsel %vm853, %v955, 0
        %965 = vmatprep.subr.mxu0 0.0
        %966 = vmatpush1.msra.mxu0 %v951
        %967 = vmatprep.subr.mxu0 0.0
        %968 = vmatpush1.msra.mxu0 %v952
        %969 = vmatprep.subr.mxu0 0.0
        %970 = vmatpush1.msra.mxu0 %v953
        %971 = vmatprep.subr.mxu0 0.0
        %972 = vmatpush1.msra.mxu0 %v954
        %973 = vmatprep.subr.mxu0 0.0
        %974 = vmatpush1.msra.mxu0 0.0
        %975 = vmatprep.subr.mxu0 0.0
        %976 = vmatpush1.msra.mxu0 0.0
        %977 = vmatprep.subr.mxu0 0.0
        %978 = vmatpush1.msra.mxu0 0.0
        %979 = vmatprep.subr.mxu0 0.0
        %980 = vmatpush1.msra.mxu0 0.0
        %981 = vmatprep.subr.mxu0 0.0
        %982 = vmatpush1.msra.mxu0 0.0
        %983 = vmatprep.subr.mxu0 0.0
        %984 = vmatpush1.msra.mxu0 0.0
        %985 = vmatprep.subr.mxu0 0.0
        %986 = vmatpush1.msra.mxu0 0.0
        %987 = vmatprep.subr.mxu0 0.0
        %988 = vmatpush1.msra.mxu0 0.0
        %989 = vmatprep.subr.mxu0 0.0
        %990 = vmatpush1.msra.mxu0 0.0
        %991 = vmatprep.subr.mxu0 0.0
        %992 = vmatpush1.msra.mxu0 0.0
        %993 = vmatprep.subr.mxu0 0.0
        %994 = vmatpush1.msra.mxu0 0.0
        %995 = vmatprep.subr.mxu0 0.0
        %996 = vmatpush1.msra.mxu0 0.0
        %997 = vmatprep.subr.mxu0 0.0
        %998 = vmatpush1.msra.mxu0 0.0
        %999 = vmatprep.subr.mxu0 0.0
        %1000 = vmatpush1.msra.mxu0 0.0
        %1001 = vmatprep.subr.mxu0 0.0
        %1002 = vmatpush1.msra.mxu0 0.0
        %1003 = vmatprep.subr.mxu0 0.0
        %1004 = vmatpush1.msra.mxu0 0.0
        %1005 = vmatprep.subr.mxu0 0.0
        %1006 = vmatpush1.msra.mxu0 0.0
        %1007 = vmatprep.subr.mxu0 0.0
        %1008 = vmatpush1.msra.mxu0 0.0
        %1009 = vmatprep.subr.mxu0 0.0
        %1010 = vmatpush1.msra.mxu0 0.0
        %1011 = vmatprep.subr.mxu0 0.0
        %1012 = vmatpush1.msra.mxu0 0.0
        %1013 = vmatprep.subr.mxu0 0.0
        %1014 = vmatpush1.msra.mxu0 0.0
        %1015 = vmatprep.subr.mxu0 0.0
        %1016 = vmatpush1.msra.mxu0 0.0
        %1017 = vmatprep.subr.mxu0 0.0
        %1018 = vmatpush1.msra.mxu0 0.0
        %1019 = vmatprep.subr.mxu0 0.0
        %1020 = vmatpush1.msra.mxu0 0.0
        %1021 = vmatprep.subr.mxu0 0.0
        %1022 = vmatpush1.msra.mxu0 0.0
        %1023 = vmatprep.subr.mxu0 0.0
        %1024 = vmatpush1.msra.mxu0 0.0
        %1025 = vmatprep.subr.mxu0 0.0
        %1026 = vmatpush1.msra.mxu0 0.0
        %1027 = vmatprep.subr.mxu0 0.0
        %1028 = vmatpush1.msra.mxu0 0.0
        %1029 = vmatprep.mubr.f32.mxu0 0.0
        %1030 = vmatmul.mubr.f32.gmra.mrb[0].mxu0 %v963
        %v1031 = vpop.f32.mrb[0].mxu0
        %v1032 = vadd.f32 %v960, %v1031
        %v1033 = vpop.f32.mrb[0].mxu0
        %1034 = vdwg.mxu0
        %v1035 = vtanh.pop %v1032
        %v1036 = vadd.f32 %v1035, 1.0
        %v1037 = vmul.f32 %v1036, 0.5
        %1038 = vst [vmem:[%s349] sm:$0x7] %v1037
        %s1039 = sand.u32 %s203, 1
        %s1040 = scalar_lea.sflag [#allocation5], %s1039
        %s1041 = sand.u32 %s203, 1
        %s1042 = smul.addr %s1041, 4
        %s1043 = scalar_lea.vmem [#allocation4], %s1042
        // Predicated region
        $region91: #{tpu_custom_call.1} parent=85 // pred_check
          %p1044 = pneg %p213
        $region92: #{tpu_custom_call.1} parent=85 // pred_check_branch
          %1046 = sbr.rel (%p1044) target = $region94
        $region93: #{tpu_custom_call.1} parent=85 // pred_region
          %s1048 = ssub.s32 64, 64
          %1049 = vsyncadd %s1040, %s1048
          %s1050 = smul.addr %s22, 64
          %s1051 = scalar_lea.hbm %s8, %s1050
          %s1053 = sshll.u32 %s1043, 4
          %s1054 = int_to_ptr.vmem [resolvable:$true] %s1053
          %1056 = dma.vmem_to_hbm [thread:$0]  %s1054, 64, %s1051, %s1040
        $region94: #{tpu_custom_call.1} parent=85 // pred_fallthru
          _
      $region86: #{tpu_custom_call.1} parent=5 // pred_fallthru
        _
      %p1057 = scmp.le.s32.totalorder 2, %s17
      // Predicated region
      $region95: #{tpu_custom_call.1} parent=5 // pred_check
        %p1058 = pneg %p1057
      $region96: #{tpu_custom_call.1} parent=5 // pred_check_branch
        %1060 = sbr.rel (%p1058) target = $region98
      $region97: #{tpu_custom_call.1} parent=5 // pred_region
        %s1061 = ssub.s32 %s17, 2
        // Predicated region
        $region99: #{tpu_custom_call.1} parent=97 // pred_check
          %p1062 = pneg %p219
        $region100: #{tpu_custom_call.1} parent=97 // pred_check_branch
          %1064 = sbr.rel (%p1062) target = $region102
        $region101: #{tpu_custom_call.1} parent=97 // pred_region
          %s1065 = sand.u32 %s204, 1
          %s1066 = scalar_lea.sflag [#allocation5], %s1065
          %s1067 = sand.u32 %s204, 1
          %s1068 = smul.addr %s1067, 4
          %s1069 = scalar_lea.vmem [#allocation4], %s1068
          %1070 = dma.done %s1066, 64
        $region102: #{tpu_custom_call.1} parent=97 // pred_fallthru
          _
      $region98: #{tpu_custom_call.1} parent=5 // pred_fallthru
        _
    $region6: #{tpu_custom_call.1} parent=1 // loop_footer
      %s21 = sadd.s32 1, %s17
    $region7: #{tpu_custom_call.1} parent=1 // loop_footer_branch
      %16 = sbr.rel target = $region3
    $region8: #{tpu_custom_call.1} parent=1 // loop_exit
      _
    %1071 = vsyncpa [#allocation5], 1
    %s1072 = scalar_lea.sflag [#allocation5], 1
    %1073 = vsyncpa %s1072, 1

</llo_original>
